<compile_context>
chip_gen: v6e
topology: v6e:2x2x1
jax: 0.10.0
libtpu: 0.0.40
codegen_flags: <defaults>
</compile_context>

<pallas_src>
import functools

import jax
import jax.numpy as jnp
from jax import lax
from jax.experimental import pallas as pl
from jax.experimental.pallas import tpu as pltpu

LANE = 128
MAX_BLOCK_ROWS = 1024   # 1024*128*4B = 512 KiB per input block
NUM_SHARDS = 2          # per-core partials (v7x megacore); serial loop on 1-TC chips


def _round_up(x, m):
    return ((x + m - 1) // m) * m


def _r2_kernel(shift_ref, yt_ref, yp_ref, acc_d_ref, acc_t_ref, acc_r_ref,
               *, n, shard_rows, block_rows, has_pad):
    shard = pl.program_id(0)
    step = pl.program_id(1)

    @pl.when(step == 0)
    def _():
        acc_d_ref[...] = jnp.zeros_like(acc_d_ref)
        acc_t_ref[...] = jnp.zeros_like(acc_t_ref)
        acc_r_ref[...] = jnp.zeros_like(acc_r_ref)

    c = shift_ref[0, 0]
    yt = yt_ref[...]
    yp = yp_ref[...]
    d = yt - c          # shifted y_true
    e = yt - yp         # residual; zero in padding (both inputs padded with 0)

    def _fold(x):
        # (block_rows, LANE) -> (8, LANE): pure VPU adds, no cross-lane work.
        return x.reshape(block_rows // 8, 8, LANE).sum(axis=0)

    def _accum(d_blk):
        acc_d_ref[...] += _fold(d_blk)
        acc_t_ref[...] += _fold(d_blk * d_blk)
        acc_r_ref[...] += _fold(e * e)

    if has_pad:
        block_elems = block_rows * LANE
        base = (shard * shard_rows + step * block_rows) * LANE
        touches_pad = base + block_elems > n

        @pl.when(jnp.logical_not(touches_pad))
        def _():
            _accum(d)

        @pl.when(touches_pad)
        def _():
            row_i = lax.broadcasted_iota(jnp.int32, (block_rows, LANE), 0)
            lane_i = lax.broadcasted_iota(jnp.int32, (block_rows, LANE), 1)
            gidx = base + row_i * LANE + lane_i
            _accum(jnp.where(gidx < n, d, 0.0))
    else:
        _accum(d)


@jax.jit
def r2_loss(y_pred, y_true):
    yt = jnp.asarray(y_true, jnp.float32).reshape(-1)
    yp = jnp.asarray(y_pred, jnp.float32).reshape(-1)
    n = yt.shape[0]

    rows = _round_up(pl.cdiv(n, LANE), 8)
    shard_rows = _round_up(pl.cdiv(rows, NUM_SHARDS), 8)
    block_rows = min(MAX_BLOCK_ROWS, shard_rows)
    shard_rows = _round_up(shard_rows, block_rows)
    total_rows = shard_rows * NUM_SHARDS
    steps = shard_rows // block_rows
    total_elems = total_rows * LANE
    has_pad = total_elems != n

    def to_tiles(x):
        if has_pad:
            x = jnp.pad(x, (0, total_elems - n))
        return x.reshape(total_rows, LANE)

    yt2 = to_tiles(yt)
    yp2 = to_tiles(yp)
    shift = yt[0].reshape(1, 1)   # numerical shift ~ a typical y_true value

    tile_spec = pl.BlockSpec((block_rows, LANE),
                             lambda s, i: (s * steps + i, 0))
    acc_spec = pl.BlockSpec((None, 8, LANE), lambda s, i: (s, 0, 0))
    acc_shape = jax.ShapeDtypeStruct((NUM_SHARDS, 8, LANE), jnp.float32)

    kernel = functools.partial(_r2_kernel, n=n, shard_rows=shard_rows,
                               block_rows=block_rows, has_pad=has_pad)

    acc_d, acc_t, acc_r = pl.pallas_call(
        kernel,
        out_shape=(acc_shape, acc_shape, acc_shape),
        grid=(NUM_SHARDS, steps),
        in_specs=[pl.BlockSpec(memory_space=pltpu.SMEM),   # shift scalar
                  tile_spec, tile_spec],
        out_specs=(acc_spec, acc_spec, acc_spec),
        compiler_params=pltpu.CompilerParams(
            dimension_semantics=("parallel", "arbitrary")),
    )(shift, yt2, yp2)

    s1 = jnp.sum(acc_d)                       # sum(yt - c)
    s2 = jnp.sum(acc_t)                       # sum((yt - c)^2)
    ss_res = jnp.sum(acc_r)                   # sum((yt - yp)^2)
    ss_tot = s2 - s1 * s1 / jnp.float32(n)    # == sum((yt - mean)^2) exactly
    # Note: ss_tot == 0 (constant y_true) yields inf/nan, matching PyTorch.
    return ss_res / ss_tot


if __name__ == "__main__":
    key = jax.random.PRNGKey(0)
    k1, k2 = jax.random.split(key)
    shape = (2, 4, 16, 16)  # NCHW-like small shape
    y_true = jax.random.normal(k1, shape, dtype=jnp.float32)
    y_pred = y_true + 0.1 * jax.random.normal(k2, shape, dtype=jnp.float32)

    out = r2_loss(y_pred, y_true)
    out = jax.block_until_ready(out)

    # Reference check against plain-JAX implementation of the torch forward.
    ym = jnp.mean(y_true)
    ref = jnp.sum((y_true - y_pred) ** 2) / jnp.sum((y_true - ym) ** 2)
    assert jnp.allclose(out, ref, rtol=1e-4, atol=1e-6), (out, ref)

    print("KERNEL_OK")
</pallas_src>

<mosaic_0001>
module attributes {stable_mosaic.version = 11 : i64} {
  func.func @_r2_kernel(%arg0: i32, %arg1: i32, %arg2: memref<1x1xf32, #tpu.memory_space<smem>>, %arg3: memref<8x128xf32, #tpu.memory_space<vmem>>, %arg4: memref<8x128xf32, #tpu.memory_space<vmem>>, %arg5: memref<1x8x128xf32, #tpu.memory_space<vmem>>, %arg6: memref<1x8x128xf32, #tpu.memory_space<vmem>>, %arg7: memref<1x8x128xf32, #tpu.memory_space<vmem>>) attributes {dimension_semantics = [#tpu.dimension_semantics<parallel>, #tpu.dimension_semantics<arbitrary>], iteration_bounds = array<i64: 2, 1>, scalar_prefetch = 0 : i64, scratch_operands = 0 : i64, tpu.core_type = #tpu.core_type<tc>, window_params = [{transform_indices = @transform_0, window_bounds = array<i64: 1, 1>}, {transform_indices = @transform_1, window_bounds = array<i64: 8, 128>}, {transform_indices = @transform_2, window_bounds = array<i64: 8, 128>}, {transform_indices = @transform_3, window_bounds = array<i64: 1, 8, 128>}, {transform_indices = @transform_4, window_bounds = array<i64: 1, 8, 128>}, {transform_indices = @transform_5, window_bounds = array<i64: 1, 8, 128>}]} {
    %c0_i32 = arith.constant 0 : i32
    %0 = arith.cmpi eq, %arg1, %c0_i32 : i32
    %1 = arith.extui %0 : i1 to i32
    %c0_i32_0 = arith.constant 0 : i32
    %2 = arith.cmpi ne, %1, %c0_i32_0 : i32
    scf.if %2 {
      %cst_26 = arith.constant 0.000000e+00 : f32
      %35 = vector.broadcast %cst_26 : f32 to vector<8x128xf32>
      %c0_27 = arith.constant 0 : index
      %c0_28 = arith.constant 0 : index
      %c0_29 = arith.constant 0 : index
      %36 = vector.load %arg5[%c0_27, %c0_28, %c0_29] : memref<1x8x128xf32, #tpu.memory_space<vmem>>, vector<1x8x128xf32>
      %37 = vector.shape_cast %36 : vector<1x8x128xf32> to vector<8x128xf32>
      %38 = vector.shape_cast %35 : vector<8x128xf32> to vector<1x8x128xf32>
      tpu.vector_store %arg5[%c0_27, %c0_28, %c0_29], %38 {strides = array<i32>} : memref<1x8x128xf32, #tpu.memory_space<vmem>>, vector<1x8x128xf32>,
      %cst_30 = arith.constant 0.000000e+00 : f32
      %39 = vector.broadcast %cst_30 : f32 to vector<8x128xf32>
      %c0_31 = arith.constant 0 : index
      %c0_32 = arith.constant 0 : index
      %c0_33 = arith.constant 0 : index
      %40 = vector.load %arg6[%c0_31, %c0_32, %c0_33] : memref<1x8x128xf32, #tpu.memory_space<vmem>>, vector<1x8x128xf32>
      %41 = vector.shape_cast %40 : vector<1x8x128xf32> to vector<8x128xf32>
      %42 = vector.shape_cast %39 : vector<8x128xf32> to vector<1x8x128xf32>
      tpu.vector_store %arg6[%c0_31, %c0_32, %c0_33], %42 {strides = array<i32>} : memref<1x8x128xf32, #tpu.memory_space<vmem>>, vector<1x8x128xf32>,
      %cst_34 = arith.constant 0.000000e+00 : f32
      %43 = vector.broadcast %cst_34 : f32 to vector<8x128xf32>
      %c0_35 = arith.constant 0 : index
      %c0_36 = arith.constant 0 : index
      %c0_37 = arith.constant 0 : index
      %44 = vector.load %arg7[%c0_35, %c0_36, %c0_37] : memref<1x8x128xf32, #tpu.memory_space<vmem>>, vector<1x8x128xf32>
      %45 = vector.shape_cast %44 : vector<1x8x128xf32> to vector<8x128xf32>
      %46 = vector.shape_cast %43 : vector<8x128xf32> to vector<1x8x128xf32>
      tpu.vector_store %arg7[%c0_35, %c0_36, %c0_37], %46 {strides = array<i32>} : memref<1x8x128xf32, #tpu.memory_space<vmem>>, vector<1x8x128xf32>,
    } else {
    }
    %c0 = arith.constant 0 : index
    %c0_1 = arith.constant 0 : index
    %3 = memref.load %arg2[%c0, %c0_1] : memref<1x1xf32, #tpu.memory_space<smem>>
    %c0_2 = arith.constant 0 : index
    %c0_3 = arith.constant 0 : index
    %4 = vector.load %arg3[%c0_2, %c0_3] : memref<8x128xf32, #tpu.memory_space<vmem>>, vector<8x128xf32>
    %c0_4 = arith.constant 0 : index
    %c0_5 = arith.constant 0 : index
    %5 = vector.load %arg4[%c0_4, %c0_5] : memref<8x128xf32, #tpu.memory_space<vmem>>, vector<8x128xf32>
    %6 = vector.broadcast %3 : f32 to vector<8x128xf32>
    %7 = arith.subf %4, %6 : vector<8x128xf32>
    %8 = arith.subf %4, %5 : vector<8x128xf32>
    %c0_6 = arith.constant 0 : index
    %c0_7 = arith.constant 0 : index
    %c0_8 = arith.constant 0 : index
    %9 = vector.load %arg5[%c0_6, %c0_7, %c0_8] : memref<1x8x128xf32, #tpu.memory_space<vmem>>, vector<1x8x128xf32>
    %10 = vector.shape_cast %9 : vector<1x8x128xf32> to vector<8x128xf32>
    %11 = vector.shape_cast %7 : vector<8x128xf32> to vector<1x8x128xf32>
    %cst = arith.constant dense<0.000000e+00> : vector<8x128xf32>
    %12 = vector.multi_reduction <add>, %11, %cst [0] : vector<1x8x128xf32> to vector<8x128xf32>
    %13 = arith.addf %10, %12 : vector<8x128xf32>
    %c0_9 = arith.constant 0 : index
    %c0_10 = arith.constant 0 : index
    %c0_11 = arith.constant 0 : index
    %14 = vector.load %arg5[%c0_9, %c0_10, %c0_11] : memref<1x8x128xf32, #tpu.memory_space<vmem>>, vector<1x8x128xf32>
    %15 = vector.shape_cast %14 : vector<1x8x128xf32> to vector<8x128xf32>
    %16 = vector.shape_cast %13 : vector<8x128xf32> to vector<1x8x128xf32>
    tpu.vector_store %arg5[%c0_9, %c0_10, %c0_11], %16 {strides = array<i32>} : memref<1x8x128xf32, #tpu.memory_space<vmem>>, vector<1x8x128xf32>,
    %c0_12 = arith.constant 0 : index
    %c0_13 = arith.constant 0 : index
    %c0_14 = arith.constant 0 : index
    %17 = vector.load %arg6[%c0_12, %c0_13, %c0_14] : memref<1x8x128xf32, #tpu.memory_space<vmem>>, vector<1x8x128xf32>
    %18 = vector.shape_cast %17 : vector<1x8x128xf32> to vector<8x128xf32>
    %19 = arith.mulf %7, %7 : vector<8x128xf32>
    %20 = vector.shape_cast %19 : vector<8x128xf32> to vector<1x8x128xf32>
    %cst_15 = arith.constant dense<0.000000e+00> : vector<8x128xf32>
    %21 = vector.multi_reduction <add>, %20, %cst_15 [0] : vector<1x8x128xf32> to vector<8x128xf32>
    %22 = arith.addf %18, %21 : vector<8x128xf32>
    %c0_16 = arith.constant 0 : index
    %c0_17 = arith.constant 0 : index
    %c0_18 = arith.constant 0 : index
    %23 = vector.load %arg6[%c0_16, %c0_17, %c0_18] : memref<1x8x128xf32, #tpu.memory_space<vmem>>, vector<1x8x128xf32>
    %24 = vector.shape_cast %23 : vector<1x8x128xf32> to vector<8x128xf32>
    %25 = vector.shape_cast %22 : vector<8x128xf32> to vector<1x8x128xf32>
    tpu.vector_store %arg6[%c0_16, %c0_17, %c0_18], %25 {strides = array<i32>} : memref<1x8x128xf32, #tpu.memory_space<vmem>>, vector<1x8x128xf32>,
    %c0_19 = arith.constant 0 : index
    %c0_20 = arith.constant 0 : index
    %c0_21 = arith.constant 0 : index
    %26 = vector.load %arg7[%c0_19, %c0_20, %c0_21] : memref<1x8x128xf32, #tpu.memory_space<vmem>>, vector<1x8x128xf32>
    %27 = vector.shape_cast %26 : vector<1x8x128xf32> to vector<8x128xf32>
    %28 = arith.mulf %8, %8 : vector<8x128xf32>
    %29 = vector.shape_cast %28 : vector<8x128xf32> to vector<1x8x128xf32>
    %cst_22 = arith.constant dense<0.000000e+00> : vector<8x128xf32>
    %30 = vector.multi_reduction <add>, %29, %cst_22 [0] : vector<1x8x128xf32> to vector<8x128xf32>
    %31 = arith.addf %27, %30 : vector<8x128xf32>
    %c0_23 = arith.constant 0 : index
    %c0_24 = arith.constant 0 : index
    %c0_25 = arith.constant 0 : index
    %32 = vector.load %arg7[%c0_23, %c0_24, %c0_25] : memref<1x8x128xf32, #tpu.memory_space<vmem>>, vector<1x8x128xf32>
    %33 = vector.shape_cast %32 : vector<1x8x128xf32> to vector<8x128xf32>
    %34 = vector.shape_cast %31 : vector<8x128xf32> to vector<1x8x128xf32>
    tpu.vector_store %arg7[%c0_23, %c0_24, %c0_25], %34 {strides = array<i32>} : memref<1x8x128xf32, #tpu.memory_space<vmem>>, vector<1x8x128xf32>,
    return
  }
  func.func @transform_0(%arg0: i32, %arg1: i32) -> (i32, i32) {
    %c0_i32 = arith.constant 0 : i32
    %c0_i32_0 = arith.constant 0 : i32
    %c0_i32_1 = arith.constant 0 : i32
    return %c0_i32, %c0_i32_0 : i32, i32
  }
  func.func @transform_1(%arg0: i32, %arg1: i32) -> (i32, i32) {
    %c1_i32 = arith.constant 1 : i32
    %0 = arith.muli %arg0, %c1_i32 : i32
    %1 = arith.addi %0, %arg1 : i32
    %c0_i32 = arith.constant 0 : i32
    %c0_i32_0 = arith.constant 0 : i32
    return %1, %c0_i32 : i32, i32
  }
  func.func @transform_2(%arg0: i32, %arg1: i32) -> (i32, i32) {
    %c1_i32 = arith.constant 1 : i32
    %0 = arith.muli %arg0, %c1_i32 : i32
    %1 = arith.addi %0, %arg1 : i32
    %c0_i32 = arith.constant 0 : i32
    %c0_i32_0 = arith.constant 0 : i32
    return %1, %c0_i32 : i32, i32
  }
  func.func @transform_3(%arg0: i32, %arg1: i32) -> (i32, i32, i32) {
    %c0_i32 = arith.constant 0 : i32
    %c0_i32_0 = arith.constant 0 : i32
    %c0_i32_1 = arith.constant 0 : i32
    return %arg0, %c0_i32, %c0_i32_0 : i32, i32, i32
  }
  func.func @transform_4(%arg0: i32, %arg1: i32) -> (i32, i32, i32) {
    %c0_i32 = arith.constant 0 : i32
    %c0_i32_0 = arith.constant 0 : i32
    %c0_i32_1 = arith.constant 0 : i32
    return %arg0, %c0_i32, %c0_i32_0 : i32, i32, i32
  }
  func.func @transform_5(%arg0: i32, %arg1: i32) -> (i32, i32, i32) {
    %c0_i32 = arith.constant 0 : i32
    %c0_i32_0 = arith.constant 0 : i32
    %c0_i32_1 = arith.constant 0 : i32
    return %arg0, %c0_i32, %c0_i32_0 : i32, i32, i32
  }
}

</mosaic_0001>

<llo_original>
// kernel: r2_loss.1
$region0: #{r2_loss.1}
  #allocation0 [shape = 'u32[]', space=smem, size = 0x4, offset = 0x4, fixed_abs, tag = 'smem constant byte address 0x4 - core index']
  #allocation1 [shape = 'u32[144,128]{1,0:T(1,128)}', space=vmem, size = 0x12000, scoped, tag = 'internal scratch']
  #allocation2 [shape = 'f32[1,1]{1,0:T(1,128)S(6)}', space=smem, size = 0x200, scoped, tag = 'scoped memory for r2_loss.1']
  %s0 = inlined_call_operand.<no memory space> [shape: f32[1,1], index: 0, kind: input, shape index: {}]
  %s1 = inlined_call_operand.vmem [shape: f32[16,128], index: 1, kind: input, shape index: {}]
  %s2 = inlined_call_operand.vmem [shape: f32[16,128], index: 2, kind: input, shape index: {}]
  %s3 = inlined_call_operand.vmem [shape: f32[2,8,128], index: 3, kind: output, shape index: {0}]
  %s4 = inlined_call_operand.vmem [shape: f32[2,8,128], index: 4, kind: output, shape index: {1}]
  %s5 = inlined_call_operand.vmem [shape: f32[2,8,128], index: 5, kind: output, shape index: {2}]
  %6 = xla_tuple %s3, %s4, %s5
  %s7 = sld [smem:[#allocation0]]
  $region65: #{r2_loss.1} parent=0
    _
  %s9 = ssub.s32 1, %s7
  %s10 = scalar_select 0, %s9, %s7
  %11 = sst [smem:[#allocation2]] %s0
  loop: start=0, step=1, limit=4
  $region2: #{r2_loss.1} parent=0 // loop_pre_header
    _
  $region3: #{r2_loss.1} parent=0 // loop_header
    %s13 = sphi 0, %s17
    %p14 = scmp.ge.s32.totalorder %s13, 4
    %s20 = sphi 0, %s32
    %s21 = sphi 0, %s28
    %s22 = sphi 0, %s20
    %s23 = sphi 0, %s21
    %s24 = sphi 0, %s22
    %s25 = sphi 0, %s23
    %s33 = sphi 0, %s33
    %s35 = sphi 0, %s33
    %s36 = sphi 0, %s35
    %s50 = sphi 0, %s36
    %s58 = sphi 0, %s60
    %s61 = sphi 0, %s58
    %s62 = sphi 0, %s61
    %s78 = sphi 0, %s62
    %s86 = sphi 0, %s88
    %s89 = sphi 0, %s86
    %s90 = sphi 0, %s89
    %s106 = sphi 0, %s90
    %s112 = sphi 0, %s114
    %s115 = sphi 0, %s112
    %s116 = sphi 0, %s115
    %s132 = sphi 0, %s116
    %s138 = sphi 0, %s140
    %s141 = sphi 0, %s138
    %s142 = sphi 0, %s141
    %s158 = sphi 0, %s142
    %s164 = sphi 0, %s166
    %s167 = sphi 0, %s164
    %s168 = sphi 0, %s167
    %s184 = sphi 0, %s168
  $region4: #{r2_loss.1} parent=0 // loop_header_branch
    %16 = sbr.rel (%p14) target = $region8
  $region5: #{r2_loss.1} parent=0 // loop_body
    %s18 = ssub.s32 %s13, 1
    %s19 = ssub.s32 %s13, 2
    %s26 = sadd.s32 1, %s21
    %p27 = scmp.ge.s32.totalorder %s26, 1
    %s28 = scalar_select %p27, 0, %s26
    %s29 = sadd.s32 1, %s20
    %s30 = scalar_select %p27, %s29, %s20
    %p31 = scmp.ge.s32.totalorder %s30, 2
    %s32 = scalar_select %p31, 0, %s30
    %s34 = sadd.s32 %s33, 1
    %p37 = scmp.eq.s32.totalorder %s13, 1
    %p38 = scmp.ne.s32.totalorder %s33, %s35
    %p39 = scmp.eq.s32.totalorder %s13, 0
    %p40 = por %p38, %p39
    %p41 = scmp.ne.s32.totalorder %s33, %s35
    %p42 = scmp.eq.s32.totalorder %s18, 1
    %p43 = por %p41, %p42
    %p44 = scmp.ne.s32.totalorder %s35, %s36
    %p45 = scmp.eq.s32.totalorder %s18, 0
    %p46 = por %p44, %p45
    %p47 = scmp.ne.s32.totalorder %s35, %s36
    %p48 = scmp.eq.s32.totalorder %s19, 1
    %p49 = por %p47, %p48
    %p51 = scmp.ne.s32.totalorder %s36, %s50
    %p52 = scmp.eq.s32.totalorder %s19, 0
    %p53 = por %p51, %p52
    %s54 = sadd.s32 %s20, %s21
    %s55 = sadd.s32 %s32, %s28
    %s56 = ssub.s32 %s54, %s55
    %p57 = scmp.eq.s32.totalorder %s56, 0
    %s59 = sadd.s32 %s58, 1
    %s60 = scalar_select %p57, %s58, %s59
    %p63 = pneg %p57
    %p64 = scmp.eq.s32.totalorder %s13, 1
    %p65 = por %p63, %p64
    %p66 = scmp.ne.s32.totalorder %s58, %s61
    %p67 = scmp.eq.s32.totalorder %s13, 0
    %p68 = por %p66, %p67
    %p69 = scmp.ne.s32.totalorder %s58, %s61
    %p70 = scmp.eq.s32.totalorder %s18, 1
    %p71 = por %p69, %p70
    %p72 = scmp.ne.s32.totalorder %s61, %s62
    %p73 = scmp.eq.s32.totalorder %s18, 0
    %p74 = por %p72, %p73
    %p75 = scmp.ne.s32.totalorder %s61, %s62
    %p76 = scmp.eq.s32.totalorder %s19, 1
    %p77 = por %p75, %p76
    %p79 = scmp.ne.s32.totalorder %s62, %s78
    %p80 = scmp.eq.s32.totalorder %s19, 0
    %p81 = por %p79, %p80
    %s82 = sadd.s32 %s20, %s21
    %s83 = sadd.s32 %s32, %s28
    %s84 = ssub.s32 %s82, %s83
    %p85 = scmp.eq.s32.totalorder %s84, 0
    %s87 = sadd.s32 %s86, 1
    %s88 = scalar_select %p85, %s86, %s87
    %p91 = pneg %p85
    %p92 = scmp.eq.s32.totalorder %s13, 1
    %p93 = por %p91, %p92
    %p94 = scmp.ne.s32.totalorder %s86, %s89
    %p95 = scmp.eq.s32.totalorder %s13, 0
    %p96 = por %p94, %p95
    %p97 = scmp.ne.s32.totalorder %s86, %s89
    %p98 = scmp.eq.s32.totalorder %s18, 1
    %p99 = por %p97, %p98
    %p100 = scmp.ne.s32.totalorder %s89, %s90
    %p101 = scmp.eq.s32.totalorder %s18, 0
    %p102 = por %p100, %p101
    %p103 = scmp.ne.s32.totalorder %s89, %s90
    %p104 = scmp.eq.s32.totalorder %s19, 1
    %p105 = por %p103, %p104
    %p107 = scmp.ne.s32.totalorder %s90, %s106
    %p108 = scmp.eq.s32.totalorder %s19, 0
    %p109 = por %p107, %p108
    %s110 = ssub.s32 %s20, %s32
    %p111 = scmp.eq.s32.totalorder %s110, 0
    %s113 = sadd.s32 %s112, 1
    %s114 = scalar_select %p111, %s112, %s113
    %p117 = pneg %p111
    %p118 = scmp.eq.s32.totalorder %s13, 1
    %p119 = por %p117, %p118
    %p120 = scmp.ne.s32.totalorder %s112, %s115
    %p121 = scmp.eq.s32.totalorder %s13, 0
    %p122 = por %p120, %p121
    %p123 = scmp.ne.s32.totalorder %s112, %s115
    %p124 = scmp.eq.s32.totalorder %s18, 1
    %p125 = por %p123, %p124
    %p126 = scmp.ne.s32.totalorder %s115, %s116
    %p127 = scmp.eq.s32.totalorder %s18, 0
    %p128 = por %p126, %p127
    %p129 = scmp.ne.s32.totalorder %s115, %s116
    %p130 = scmp.eq.s32.totalorder %s19, 1
    %p131 = por %p129, %p130
    %p133 = scmp.ne.s32.totalorder %s116, %s132
    %p134 = scmp.eq.s32.totalorder %s19, 0
    %p135 = por %p133, %p134
    %s136 = ssub.s32 %s20, %s32
    %p137 = scmp.eq.s32.totalorder %s136, 0
    %s139 = sadd.s32 %s138, 1
    %s140 = scalar_select %p137, %s138, %s139
    %p143 = pneg %p137
    %p144 = scmp.eq.s32.totalorder %s13, 1
    %p145 = por %p143, %p144
    %p146 = scmp.ne.s32.totalorder %s138, %s141
    %p147 = scmp.eq.s32.totalorder %s13, 0
    %p148 = por %p146, %p147
    %p149 = scmp.ne.s32.totalorder %s138, %s141
    %p150 = scmp.eq.s32.totalorder %s18, 1
    %p151 = por %p149, %p150
    %p152 = scmp.ne.s32.totalorder %s141, %s142
    %p153 = scmp.eq.s32.totalorder %s18, 0
    %p154 = por %p152, %p153
    %p155 = scmp.ne.s32.totalorder %s141, %s142
    %p156 = scmp.eq.s32.totalorder %s19, 1
    %p157 = por %p155, %p156
    %p159 = scmp.ne.s32.totalorder %s142, %s158
    %p160 = scmp.eq.s32.totalorder %s19, 0
    %p161 = por %p159, %p160
    %s162 = ssub.s32 %s20, %s32
    %p163 = scmp.eq.s32.totalorder %s162, 0
    %s165 = sadd.s32 %s164, 1
    %s166 = scalar_select %p163, %s164, %s165
    %p169 = pneg %p163
    %p170 = scmp.eq.s32.totalorder %s13, 1
    %p171 = por %p169, %p170
    %p172 = scmp.ne.s32.totalorder %s164, %s167
    %p173 = scmp.eq.s32.totalorder %s13, 0
    %p174 = por %p172, %p173
    %p175 = scmp.ne.s32.totalorder %s164, %s167
    %p176 = scmp.eq.s32.totalorder %s18, 1
    %p177 = por %p175, %p176
    %p178 = scmp.ne.s32.totalorder %s167, %s168
    %p179 = scmp.eq.s32.totalorder %s18, 0
    %p180 = por %p178, %p179
    %p181 = scmp.ne.s32.totalorder %s167, %s168
    %p182 = scmp.eq.s32.totalorder %s19, 1
    %p183 = por %p181, %p182
    %p185 = scmp.ne.s32.totalorder %s168, %s184
    %p186 = scmp.eq.s32.totalorder %s19, 0
    %p187 = por %p185, %p186
    %p188 = scmp.le.s32.totalorder 1, %s13
    %p189 = scmp.lt.s32.totalorder %s13, 3
    %p190 = pnand %p188, %p189
    %p191 = pneg %p190
    // Predicated region
    $region9: #{r2_loss.1} parent=5 // pred_check
      _
    $region10: #{r2_loss.1} parent=5 // pred_check_branch
      %193 = sbr.rel (%p190) target = $region12
    $region11: #{r2_loss.1} parent=5 // pred_region
      %s194 = ssub.s32 %s13, 1
      // Predicated region
      $region13: #{r2_loss.1} parent=11 // pred_check
        %p195 = pneg %p46
      $region14: #{r2_loss.1} parent=11 // pred_check_branch
        %197 = sbr.rel (%p195) target = $region16
      $region15: #{r2_loss.1} parent=11 // pred_region
        _
      $region16: #{r2_loss.1} parent=11 // pred_fallthru
        _
    $region12: #{r2_loss.1} parent=5 // pred_fallthru
      _
    %p198 = scmp.lt.s32.totalorder %s13, 2
    // Predicated region
    $region17: #{r2_loss.1} parent=5 // pred_check
      %p199 = pneg %p198
    $region18: #{r2_loss.1} parent=5 // pred_check_branch
      %201 = sbr.rel (%p199) target = $region20
    $region19: #{r2_loss.1} parent=5 // pred_region
      // Predicated region
      $region21: #{r2_loss.1} parent=19 // pred_check
        %p202 = pneg %p68
      $region22: #{r2_loss.1} parent=19 // pred_check_branch
        %204 = sbr.rel (%p202) target = $region24
      $region23: #{r2_loss.1} parent=19 // pred_region
        %s205 = sadd.s32 %s20, %s21
        %p206 = scmp.lt.s32.totalorder %s205, 1
        %s207 = scalar_select %p206, %s205, 1
        %s208 = smul.addr %s207, 8
        %s209 = scalar_lea.vmem %s1, %s208
        %s210 = sadd.s32 %s20, %s21
      $region24: #{r2_loss.1} parent=19 // pred_fallthru
        _
      // Predicated region
      $region25: #{r2_loss.1} parent=19 // pred_check
        %p211 = pneg %p96
      $region26: #{r2_loss.1} parent=19 // pred_check_branch
        %213 = sbr.rel (%p211) target = $region28
      $region27: #{r2_loss.1} parent=19 // pred_region
        %s214 = sadd.s32 %s20, %s21
        %p215 = scmp.lt.s32.totalorder %s214, 1
        %s216 = scalar_select %p215, %s214, 1
        %s217 = smul.addr %s216, 8
        %s218 = scalar_lea.vmem %s2, %s217
        %s219 = sadd.s32 %s20, %s21
      $region28: #{r2_loss.1} parent=19 // pred_fallthru
        _
    $region20: #{r2_loss.1} parent=5 // pred_fallthru
      _
    %p220 = scmp.le.s32.totalorder 1, %s13
    %p221 = scmp.lt.s32.totalorder %s13, 3
    %p222 = pnand %p220, %p221
    %p223 = pneg %p222
    // Predicated region
    $region29: #{r2_loss.1} parent=5 // pred_check
      _
    $region30: #{r2_loss.1} parent=5 // pred_check_branch
      %225 = sbr.rel (%p222) target = $region32
    $region31: #{r2_loss.1} parent=5 // pred_region
      %s226 = ssub.s32 %s13, 1
      %p227 = pneg %p46
      %p228 = pneg %p43
      %s229 = sadd.s32 %s22, %s23
      %p230 = scmp.lt.s32.totalorder %s229, 1
      %s231 = scalar_select %p230, %s229, 1
      %s232 = smul.addr %s231, 8
      %s233 = scalar_lea.vmem %s1, %s232
      %p234 = pneg %p74
      %p235 = pneg %p71
      %s236 = sadd.s32 %s22, %s23
      %p237 = scmp.lt.s32.totalorder %s236, 1
      %s238 = scalar_select %p237, %s236, 1
      %s239 = smul.addr %s238, 8
      %s240 = scalar_lea.vmem %s2, %s239
      %p241 = pneg %p102
      %p242 = pneg %p99
      %p243 = pneg %p128
      %p244 = pneg %p125
      %p245 = scmp.lt.s32.totalorder %s22, 1
      %s246 = scalar_select %p245, %s22, 1
      %s247 = smul.addr %s246, 8
      %s248 = scalar_lea.vmem %s3, %s247
      %p249 = pneg %p154
      %p250 = pneg %p151
      %p251 = scmp.lt.s32.totalorder %s22, 1
      %s252 = scalar_select %p251, %s22, 1
      %s253 = smul.addr %s252, 8
      %s254 = scalar_lea.vmem %s4, %s253
      %p255 = pneg %p180
      %p256 = pneg %p177
      %p257 = scmp.lt.s32.totalorder %s22, 1
      %s258 = scalar_select %p257, %s22, 1
      %s259 = smul.addr %s258, 8
      %s260 = scalar_lea.vmem %s5, %s259
      %s261 = sadd.s32 %s22, %s23
      %p262 = scmp.lt.s32.totalorder %s261, 1
      %s263 = scalar_select %p262, %s261, 1
      %s264 = smul.addr %s263, 8
      %s265 = scalar_lea.vmem %s1, %s264
      %s266 = sadd.s32 %s22, %s23
      %s267 = sadd.s32 %s22, %s23
      %p268 = scmp.lt.s32.totalorder %s267, 1
      %s269 = scalar_select %p268, %s267, 1
      %s270 = smul.addr %s269, 8
      %s271 = scalar_lea.vmem %s2, %s270
      %s272 = sadd.s32 %s22, %s23
      %p273 = scmp.lt.s32.totalorder %s22, 1
      %s274 = scalar_select %p273, %s22, 1
      %s275 = smul.addr %s274, 8
      %s276 = scalar_lea.vmem %s3, %s275
      %p277 = scmp.lt.s32.totalorder %s22, 1
      %s278 = scalar_select %p277, %s22, 1
      %s279 = smul.addr %s278, 8
      %s280 = scalar_lea.vmem %s4, %s279
      %p281 = scmp.lt.s32.totalorder %s22, 1
      %s282 = scalar_select %p281, %s22, 1
      %s283 = smul.addr %s282, 8
      %s284 = scalar_lea.vmem %s5, %s283
      %p285 = scmp.eq.s32.totalorder %s23, 0
      // Predicated region
      $region33: #{r2_loss.1} parent=31 // pred_check
        %p286 = pneg %p285
      $region34: #{r2_loss.1} parent=31 // pred_check_branch
        %288 = sbr.rel (%p286) target = $region36
      $region35: #{r2_loss.1} parent=31 // pred_region
        %289 = vst [vmem:[%s276] sm:$0xff] 0.0
        %290 = vst [vmem:[%s280] sm:$0xff] 0.0
        %291 = vst [vmem:[%s284] sm:$0xff] 0.0
      $region36: #{r2_loss.1} parent=31 // pred_fallthru
        _
      %s292 = sld [smem:[#allocation2]]
      %v293 = vld [vmem:[%s265] sm:$0xff]
      %v294 = vld [vmem:[%s271] sm:$0xff]
      %v295 = vstv %s292
      %v296 = vsub.f32 %v293, %v295
      %v297 = vsub.f32 %v293, %v294
      %v298 = vld [vmem:[%s276] sm:$0xff]
      %v299 = vadd.f32 %v296, 0.0
      %v300 = vadd.f32 %v298, %v299
      %301 = vst [vmem:[%s276] sm:$0xff] %v300
      %v302 = vld [vmem:[%s280] sm:$0xff]
      %v303 = vmul.f32 %v296, %v296
      %v304 = vadd.f32 %v303, 0.0
      %v305 = vadd.f32 %v302, %v304
      %306 = vst [vmem:[%s280] sm:$0xff] %v305
      %v307 = vld [vmem:[%s284] sm:$0xff]
      %v308 = vmul.f32 %v297, %v297
      %v309 = vadd.f32 %v308, 0.0
      %v310 = vadd.f32 %v307, %v309
      %311 = vst [vmem:[%s284] sm:$0xff] %v310
      %p312 = scmp.lt.s32.totalorder %s22, 1
      %s313 = scalar_select %p312, %s22, 1
      %s314 = smul.addr %s313, 8
      %s315 = scalar_lea.vmem %s3, %s314
      %p316 = scmp.lt.s32.totalorder %s22, 1
      %s317 = scalar_select %p316, %s22, 1
      %s318 = smul.addr %s317, 8
      %s319 = scalar_lea.vmem %s4, %s318
      %p320 = scmp.lt.s32.totalorder %s22, 1
      %s321 = scalar_select %p320, %s22, 1
      %s322 = smul.addr %s321, 8
      %s323 = scalar_lea.vmem %s5, %s322
      // Predicated region
      $region37: #{r2_loss.1} parent=31 // pred_check
        %p324 = pneg %p125
      $region38: #{r2_loss.1} parent=31 // pred_check_branch
        %326 = sbr.rel (%p324) target = $region40
      $region39: #{r2_loss.1} parent=31 // pred_region
        _
      $region40: #{r2_loss.1} parent=31 // pred_fallthru
        _
      // Predicated region
      $region41: #{r2_loss.1} parent=31 // pred_check
        %p327 = pneg %p151
      $region42: #{r2_loss.1} parent=31 // pred_check_branch
        %329 = sbr.rel (%p327) target = $region44
      $region43: #{r2_loss.1} parent=31 // pred_region
        _
      $region44: #{r2_loss.1} parent=31 // pred_fallthru
        _
      // Predicated region
      $region45: #{r2_loss.1} parent=31 // pred_check
        %p330 = pneg %p177
      $region46: #{r2_loss.1} parent=31 // pred_check_branch
        %332 = sbr.rel (%p330) target = $region48
      $region47: #{r2_loss.1} parent=31 // pred_region
        _
      $region48: #{r2_loss.1} parent=31 // pred_fallthru
        _
    $region32: #{r2_loss.1} parent=5 // pred_fallthru
      _
    %p333 = scmp.le.s32.totalorder 2, %s13
    // Predicated region
    $region49: #{r2_loss.1} parent=5 // pred_check
      %p334 = pneg %p333
    $region50: #{r2_loss.1} parent=5 // pred_check_branch
      %336 = sbr.rel (%p334) target = $region52
    $region51: #{r2_loss.1} parent=5 // pred_region
      %s337 = ssub.s32 %s13, 2
      // Predicated region
      $region53: #{r2_loss.1} parent=51 // pred_check
        %p338 = pneg %p131
      $region54: #{r2_loss.1} parent=51 // pred_check_branch
        %340 = sbr.rel (%p338) target = $region56
      $region55: #{r2_loss.1} parent=51 // pred_region
        %p341 = scmp.lt.s32.totalorder %s24, 1
        %s342 = scalar_select %p341, %s24, 1
        %s343 = smul.addr %s342, 8
        %s344 = scalar_lea.vmem %s3, %s343
      $region56: #{r2_loss.1} parent=51 // pred_fallthru
        _
      // Predicated region
      $region57: #{r2_loss.1} parent=51 // pred_check
        %p345 = pneg %p157
      $region58: #{r2_loss.1} parent=51 // pred_check_branch
        %347 = sbr.rel (%p345) target = $region60
      $region59: #{r2_loss.1} parent=51 // pred_region
        %p348 = scmp.lt.s32.totalorder %s24, 1
        %s349 = scalar_select %p348, %s24, 1
        %s350 = smul.addr %s349, 8
        %s351 = scalar_lea.vmem %s4, %s350
      $region60: #{r2_loss.1} parent=51 // pred_fallthru
        _
      // Predicated region
      $region61: #{r2_loss.1} parent=51 // pred_check
        %p352 = pneg %p183
      $region62: #{r2_loss.1} parent=51 // pred_check_branch
        %354 = sbr.rel (%p352) target = $region64
      $region63: #{r2_loss.1} parent=51 // pred_region
        %p355 = scmp.lt.s32.totalorder %s24, 1
        %s356 = scalar_select %p355, %s24, 1
        %s357 = smul.addr %s356, 8
        %s358 = scalar_lea.vmem %s5, %s357
      $region64: #{r2_loss.1} parent=51 // pred_fallthru
        _
    $region52: #{r2_loss.1} parent=5 // pred_fallthru
      _
  $region6: #{r2_loss.1} parent=0 // loop_footer
    %s17 = sadd.s32 1, %s13
  $region7: #{r2_loss.1} parent=0 // loop_footer_branch
    %12 = sbr.rel target = $region3
  $region8: #{r2_loss.1} parent=0 // loop_exit
    _

</llo_original>
